<compile_context>
chip_gen: v7x
topology: tpu7x:2x2x1
jax: 0.10.0
libtpu: 0.0.40
codegen_flags: <defaults>
</compile_context>

<pallas_src>
import functools
import math

import jax
import jax.numpy as jnp
from jax.experimental import pallas as pl
from jax.experimental.pallas import tpu as pltpu

_VMEM_LIMIT = 48 * 1024 * 1024   # explicit budget: safe on v5e/v6e (128 MiB) and v7x (64 MiB)
_M_TILE = 512                    # rows per grid step for projection / out-norm kernels


# ---------------------------------------------------------------------------
# Kernel 1: linear projection  y = x @ W + b   (W possibly bf16, f32 accumulate)
# ---------------------------------------------------------------------------
def _linear_kernel(x_ref, w_ref, b_ref, o_ref):
    x = x_ref[...].astype(w_ref.dtype)            # cast activation at the MXU input
    y = jnp.dot(x, w_ref[...], preferred_element_type=jnp.float32)
    o_ref[...] = (y + b_ref[...]).astype(o_ref.dtype)


def _linear_call(x2d, w, b):
    m, e_in = x2d.shape
    e_out = w.shape[1]
    tm = m if m <= _M_TILE else _M_TILE
    return pl.pallas_call(
        _linear_kernel,
        out_shape=jax.ShapeDtypeStruct((m, e_out), jnp.float32),
        grid=(pl.cdiv(m, tm),),
        in_specs=[
            pl.BlockSpec((tm, e_in), lambda i: (i, 0)),
            pl.BlockSpec((e_in, e_out), lambda i: (0, 0)),
            pl.BlockSpec((1, e_out), lambda i: (0, 0)),
        ],
        out_specs=pl.BlockSpec((tm, e_out), lambda i: (i, 0)),
        compiler_params=pltpu.CompilerParams(
            dimension_semantics=("parallel",),
            vmem_limit_bytes=_VMEM_LIMIT),
    )(x2d, w, b.reshape(1, e_out).astype(jnp.float32))


# ---------------------------------------------------------------------------
# Kernel 2: attention core, one batch element per grid step, heads unrolled
# ---------------------------------------------------------------------------
def _attention_kernel(*refs, scaling, num_heads, num_normal_heads, has_mask,
                      use_relation, mxu_dtype):
    q_ref, k_ref, v_ref = refs[:3]
    i = 3
    mask_ref = rel_ref = None
    if has_mask:
        mask_ref = refs[i]; i += 1
    if use_relation:
        rel_ref = refs[i]; i += 1
    o_ref = refs[i]

    if has_mask:
        # loaded once per batch element, shared across all heads
        masked = mask_ref[...].astype(jnp.int32) != 0          # (Nq, Nk) bool

    for h in range(num_heads):                                  # static unroll
        # scaling folded into q: VPU mul over (Nq, D) instead of (Nq, Nk)
        q_h = (q_ref[:, h, :] * scaling).astype(mxu_dtype)      # (Nq, D)
        k_h = k_ref[:, h, :].astype(mxu_dtype)                  # (Nk, D)
        v_h = v_ref[:, h, :].astype(mxu_dtype)                  # (Nk, D)

        s = jnp.dot(q_h, k_h.T, preferred_element_type=jnp.float32)   # (Nq, Nk) f32
        if has_mask:
            s = jnp.where(masked, -jnp.inf, s)

        m = jnp.max(s, axis=-1, keepdims=True)
        p = jnp.exp(s - m)                                      # reused by both paths
        if use_relation and h >= num_normal_heads:
            # exp(s)*r / (sum(exp(s)*r) + 1e-6), stabilized by exp(-m)
            pr = p * rel_ref[h - num_normal_heads]
            denom = jnp.sum(pr, axis=-1, keepdims=True) + 1e-6 * jnp.exp(-m)
            attn = pr * pl.reciprocal(denom, approx=True)
        else:
            attn = p * pl.reciprocal(jnp.sum(p, axis=-1, keepdims=True), approx=True)

        # dropout: identity (inference)
        out_h = jnp.dot(attn.astype(mxu_dtype), v_h, preferred_element_type=jnp.float32)
        o_ref[:, h, :] = out_h.astype(o_ref.dtype)              # (Nq, D) slab of (Nq, H, D)


# ---------------------------------------------------------------------------
# Kernel 3: out_proj + LayerNorm fused (LayerNorm math kept in f32)
# ---------------------------------------------------------------------------
def _out_norm_kernel(x_ref, w_ref, b_ref, g_ref, beta_ref, o_ref):
    x = x_ref[...].astype(w_ref.dtype)
    y = jnp.dot(x, w_ref[...], preferred_element_type=jnp.float32) + b_ref[...]
    mean = jnp.mean(y, axis=-1, keepdims=True)
    var = jnp.mean(jnp.square(y - mean), axis=-1, keepdims=True)
    yn = (y - mean) * jax.lax.rsqrt(var + 1e-5)
    o_ref[...] = (yn * g_ref[...] + beta_ref[...]).astype(o_ref.dtype)


def _out_norm_call(x2d, w, b, gamma, beta):
    m, e_in = x2d.shape
    e_out = w.shape[1]
    tm = m if m <= _M_TILE else _M_TILE
    return pl.pallas_call(
        _out_norm_kernel,
        out_shape=jax.ShapeDtypeStruct((m, e_out), jnp.float32),
        grid=(pl.cdiv(m, tm),),
        in_specs=[
            pl.BlockSpec((tm, e_in), lambda i: (i, 0)),
            pl.BlockSpec((e_in, e_out), lambda i: (0, 0)),
            pl.BlockSpec((1, e_out), lambda i: (0, 0)),
            pl.BlockSpec((1, e_out), lambda i: (0, 0)),
            pl.BlockSpec((1, e_out), lambda i: (0, 0)),
        ],
        out_specs=pl.BlockSpec((tm, e_out), lambda i: (i, 0)),
        compiler_params=pltpu.CompilerParams(
            dimension_semantics=("parallel",),
            vmem_limit_bytes=_VMEM_LIMIT),
    )(x2d, w, b.reshape(1, e_out).astype(jnp.float32),
      gamma.reshape(1, e_out).astype(jnp.float32),
      beta.reshape(1, e_out).astype(jnp.float32))


# ---------------------------------------------------------------------------
# Full forward (glue in plain JAX; returns output only, attn weights not returned)
# ---------------------------------------------------------------------------
def relation_aware_attention(query, key, value, params, *, num_heads,
                             num_relation_heads, relation_weights=None,
                             attn_mask=None, skip_relation=False,
                             mxu_dtype=jnp.bfloat16):
    B, Nq, E = query.shape
    Nk = key.shape[1]
    H = num_heads
    D = E // H
    num_normal_heads = H - num_relation_heads
    scaling = D ** (-0.5)

    # cast weights once for the MXU (production code would pre-cast the params)
    wq = params["wq"].astype(mxu_dtype)
    wk = params["wk"].astype(mxu_dtype)
    wv = params["wv"].astype(mxu_dtype)
    bq, bk, bv = params["bq"], params["bk"], params["bv"]

    # ---- projections (fused where the activation is shared) ------------------
    if (query is key) and (key is value):
        # self-attention: single (E, 3E) matmul -> read x from HBM once
        qkv = _linear_call(query.reshape(B * Nq, E),
                           jnp.concatenate([wq, wk, wv], axis=1),
                           jnp.concatenate([bq, bk, bv]))
        packed = qkv.reshape(B, Nq, 3, H, D)                 # free reshape (contiguous)
        q_arr = k_arr = v_arr = packed
        q_spec = pl.BlockSpec((None, Nq, None, H, D), lambda b: (b, 0, 0, 0, 0))
        k_spec = pl.BlockSpec((None, Nk, None, H, D), lambda b: (b, 0, 1, 0, 0))
        v_spec = pl.BlockSpec((None, Nk, None, H, D), lambda b: (b, 0, 2, 0, 0))
    elif key is value:
        q_arr = _linear_call(query.reshape(B * Nq, E), wq, bq).reshape(B, Nq, H, D)
        kv = _linear_call(key.reshape(B * Nk, E),
                          jnp.concatenate([wk, wv], axis=1),
                          jnp.concatenate([bk, bv]))
        packed = kv.reshape(B, Nk, 2, H, D)
        k_arr = v_arr = packed
        q_spec = pl.BlockSpec((None, Nq, H, D), lambda b: (b, 0, 0, 0))
        k_spec = pl.BlockSpec((None, Nk, None, H, D), lambda b: (b, 0, 0, 0, 0))
        v_spec = pl.BlockSpec((None, Nk, None, H, D), lambda b: (b, 0, 1, 0, 0))
    else:
        q_arr = _linear_call(query.reshape(B * Nq, E), wq, bq).reshape(B, Nq, H, D)
        k_arr = _linear_call(key.reshape(B * Nk, E), wk, bk).reshape(B, Nk, H, D)
        v_arr = _linear_call(value.reshape(B * Nk, E), wv, bv).reshape(B, Nk, H, D)
        q_spec = pl.BlockSpec((None, Nq, H, D), lambda b: (b, 0, 0, 0))
        k_spec = pl.BlockSpec((None, Nk, H, D), lambda b: (b, 0, 0, 0))
        v_spec = pl.BlockSpec((None, Nk, H, D), lambda b: (b, 0, 0, 0))

    # ---- attention core -------------------------------------------------------
    use_relation = (not skip_relation) and (relation_weights is not None)
    has_mask = attn_mask is not None

    inputs = [q_arr, k_arr, v_arr]
    in_specs = [q_spec, k_spec, v_spec]

    if has_mask:
        if attn_mask.ndim == 2:
            mask_arr = attn_mask.reshape(1, Nq, Nk).astype(jnp.int8)
            mask_bcast = True
        else:
            mask_arr = attn_mask.astype(jnp.int8)
            mask_bcast = mask_arr.shape[0] == 1
        if mask_bcast:
            mask_spec = pl.BlockSpec((None, Nq, Nk), lambda b: (0, 0, 0))
        else:
            mask_spec = pl.BlockSpec((None, Nq, Nk), lambda b: (b, 0, 0))
        inputs.append(mask_arr)
        in_specs.append(mask_spec)

    if use_relation:
        rel = relation_weights.astype(jnp.float32)           # (B, R, Nq, Nk), no padding
        R = rel.shape[1]
        inputs.append(rel)
        in_specs.append(pl.BlockSpec((None, R, Nq, Nk), lambda b: (b, 0, 0, 0)))

    kernel = functools.partial(
        _attention_kernel,
        scaling=scaling,
        num_heads=H,
        num_normal_heads=num_normal_heads,
        has_mask=has_mask,
        use_relation=use_relation,
        mxu_dtype=mxu_dtype,
    )

    out_heads = pl.pallas_call(
        kernel,
        out_shape=jax.ShapeDtypeStruct((B, Nq, H, D), jnp.float32),
        grid=(B,),
        in_specs=in_specs,
        out_specs=pl.BlockSpec((None, Nq, H, D), lambda b: (b, 0, 0, 0)),
        compiler_params=pltpu.CompilerParams(
            dimension_semantics=("parallel",),
            vmem_limit_bytes=_VMEM_LIMIT),
    )(*inputs)

    # ---- out_proj + LayerNorm (fused) ----------------------------------------
    out2d = out_heads.reshape(B * Nq, E)                     # free reshape (contiguous)
    out2d = _out_norm_call(out2d, params["wo"].astype(mxu_dtype), params["bo"],
                           params["ln_g"], params["ln_b"])
    return out2d.reshape(B, Nq, E)


# ---------------------------------------------------------------------------
# Pure JAX reference (mirrors the PyTorch forward, dropout in eval mode)
# ---------------------------------------------------------------------------
def reference(query, key, value, params, *, num_heads, num_relation_heads,
              relation_weights=None, attn_mask=None, skip_relation=False):
    B, Nq, E = query.shape
    Nk = key.shape[1]
    H, D = num_heads, E // num_heads
    nn_heads = H - num_relation_heads
    scaling = D ** (-0.5)

    q = query.reshape(B * Nq, E) @ params["wq"] + params["bq"]
    k = key.reshape(B * Nk, E) @ params["wk"] + params["bk"]
    v = value.reshape(B * Nk, E) @ params["wv"] + params["bv"]
    q = q.reshape(B, Nq, H, D).transpose(0, 2, 1, 3)
    k = k.reshape(B, Nk, H, D).transpose(0, 2, 1, 3)
    v = v.reshape(B, Nk, H, D).transpose(0, 2, 1, 3)

    aw = jnp.einsum("bhqd,bhkd->bhqk", q, k) * scaling
    if attn_mask is not None:
        m = attn_mask
        if m.ndim == 2:
            m = m[None, None]
        elif m.ndim == 3:
            m = m[:, None]
        aw = jnp.where(m, -jnp.inf, aw)
    if (not skip_relation) and (relation_weights is not None):
        if num_relation_heads == H:
            aw = jnp.exp(aw) * relation_weights
            aw = aw / (jnp.sum(aw, axis=-1, keepdims=True) + 1e-6)
        else:
            rel = jnp.exp(aw[:, -num_relation_heads:]) * relation_weights
            rel = rel / (jnp.sum(rel, axis=-1, keepdims=True) + 1e-6)
            nrm = jax.nn.softmax(aw[:, :nn_heads], axis=-1)
            aw = jnp.concatenate([nrm, rel], axis=1)
    else:
        aw = jax.nn.softmax(aw, axis=-1)

    out = jnp.einsum("bhqk,bhkd->bhqd", aw, v)
    out = out.transpose(0, 2, 1, 3).reshape(B * Nq, E)
    out = out @ params["wo"] + params["bo"]
    mean = jnp.mean(out, axis=-1, keepdims=True)
    var = jnp.mean((out - mean) ** 2, axis=-1, keepdims=True)
    out = (out - mean) * jax.lax.rsqrt(var + 1e-5)
    out = out * params["ln_g"] + params["ln_b"]
    return out.reshape(B, Nq, E)


# ---------------------------------------------------------------------------
if __name__ == "__main__":
    B, Nq, Nk = 2, 8, 8
    E, H, R = 32, 4, 2

    key0 = jax.random.PRNGKey(0)
    ks = jax.random.split(key0, 20)
    std = 1.0 / math.sqrt(E)

    params = {
        "wq": jax.random.normal(ks[0], (E, E), jnp.float32) * std,
        "bq": jax.random.normal(ks[1], (E,), jnp.float32) * 0.01,
        "wk": jax.random.normal(ks[2], (E, E), jnp.float32) * std,
        "bk": jax.random.normal(ks[3], (E,), jnp.float32) * 0.01,
        "wv": jax.random.normal(ks[4], (E, E), jnp.float32) * std,
        "bv": jax.random.normal(ks[5], (E,), jnp.float32) * 0.01,
        "wo": jax.random.normal(ks[6], (E, E), jnp.float32) * std,
        "bo": jax.random.normal(ks[7], (E,), jnp.float32) * 0.01,
        "ln_g": jnp.ones((E,), jnp.float32),
        "ln_b": jnp.zeros((E,), jnp.float32),
    }

    # ---- Test A: self-attention (fully fused QKV), bf16 MXU, relation + 3D mask
    x = jax.random.normal(ks[8], (B, Nq, E), jnp.float32)
    rel_a = jax.nn.sigmoid(jax.random.normal(ks[9], (B, R, Nq, Nq), jnp.float32))
    mask_a = jax.random.uniform(ks[10], (B, Nq, Nq)) > 0.85
    mask_a = mask_a.at[:, :, 0].set(False)          # no fully-masked query rows

    out_a = relation_aware_attention(
        x, x, x, params, num_heads=H, num_relation_heads=R,
        relation_weights=rel_a, attn_mask=mask_a, mxu_dtype=jnp.bfloat16)
    out_a = jax.block_until_ready(out_a)
    ref_a = reference(x, x, x, params, num_heads=H, num_relation_heads=R,
                      relation_weights=rel_a, attn_mask=mask_a)
    assert out_a.shape == (B, Nq, E)
    assert jnp.allclose(out_a, ref_a, atol=5e-2, rtol=5e-2), (
        float(jnp.max(jnp.abs(out_a - ref_a))))

    # ---- Test B: cross-attention (fused KV), f32 MXU, relation + 2D mask
    q_in = jax.random.normal(ks[11], (B, Nq, E), jnp.float32)
    mem = jax.random.normal(ks[12], (B, Nk, E), jnp.float32)
    rel_b = jax.nn.sigmoid(jax.random.normal(ks[13], (B, R, Nq, Nk), jnp.float32))
    mask_b = jax.random.uniform(ks[14], (Nq, Nk)) > 0.85
    mask_b = mask_b.at[:, 0].set(False)

    out_b = relation_aware_attention(
        q_in, mem, mem, params, num_heads=H, num_relation_heads=R,
        relation_weights=rel_b, attn_mask=mask_b, mxu_dtype=jnp.float32)
    out_b = jax.block_until_ready(out_b)
    ref_b = reference(q_in, mem, mem, params, num_heads=H, num_relation_heads=R,
                      relation_weights=rel_b, attn_mask=mask_b)
    assert jnp.allclose(out_b, ref_b, atol=2e-2, rtol=2e-2), (
        float(jnp.max(jnp.abs(out_b - ref_b))))

    # ---- Test C: distinct q/k/v, no mask, skip_relation, f32 MXU
    v_in = jax.random.normal(ks[15], (B, Nk, E), jnp.float32)
    out_c = relation_aware_attention(
        q_in, mem, v_in, params, num_heads=H, num_relation_heads=R,
        relation_weights=rel_b, attn_mask=None, skip_relation=True,
        mxu_dtype=jnp.float32)
    out_c = jax.block_until_ready(out_c)
    ref_c = reference(q_in, mem, v_in, params, num_heads=H, num_relation_heads=R,
                      relation_weights=rel_b, attn_mask=None, skip_relation=True)
    assert jnp.allclose(out_c, ref_c, atol=2e-2, rtol=2e-2), (
        float(jnp.max(jnp.abs(out_c - ref_c))))

    print("KERNEL_OK")
</pallas_src>

<mosaic_0001>
module attributes {stable_mosaic.version = 11 : i64} {
  func.func @_linear_kernel(%arg0: i32, %arg1: memref<16x32xf32, #tpu.memory_space<vmem>>, %arg2: memref<32x96xbf16, #tpu.memory_space<vmem>>, %arg3: memref<1x96xf32, #tpu.memory_space<vmem>>, %arg4: memref<16x96xf32, #tpu.memory_space<vmem>>) attributes {dimension_semantics = [#tpu.dimension_semantics<parallel>], iteration_bounds = array<i64: 1>, scalar_prefetch = 0 : i64, scratch_operands = 0 : i64, tpu.core_type = #tpu.core_type<tc>, window_params = [{transform_indices = @transform_0, window_bounds = array<i64: 16, 32>}, {pipeline_mode = #tpu.pipeline_mode<synchronous>, transform_indices = @transform_1, window_bounds = array<i64: 32, 96>}, {pipeline_mode = #tpu.pipeline_mode<synchronous>, transform_indices = @transform_2, window_bounds = array<i64: 1, 96>}, {transform_indices = @transform_3, window_bounds = array<i64: 16, 96>}]} {
    %c0 = arith.constant 0 : index
    %c0_0 = arith.constant 0 : index
    %0 = vector.load %arg1[%c0, %c0_0] : memref<16x32xf32, #tpu.memory_space<vmem>>, vector<16x32xf32>
    %1 = arith.truncf %0 : vector<16x32xf32> to vector<16x32xbf16>
    %c0_1 = arith.constant 0 : index
    %c0_2 = arith.constant 0 : index
    %2 = vector.load %arg2[%c0_1, %c0_2] : memref<32x96xbf16, #tpu.memory_space<vmem>>, vector<32x96xbf16>
    %cst = arith.constant dense<0.000000e+00> : vector<16x96xf32>
    %3 = tpu.matmul %1, %2, %cst {dimension_numbers = #tpu.dot_dimension_numbers<[1], [0], [0], [1], [0, 0, 1, 1], [], []>} : vector<16x32xbf16>, vector<32x96xbf16>, vector<16x96xf32> -> vector<16x96xf32>
    %c0_3 = arith.constant 0 : index
    %c0_4 = arith.constant 0 : index
    %4 = vector.load %arg3[%c0_3, %c0_4] : memref<1x96xf32, #tpu.memory_space<vmem>>, vector<1x96xf32>
    %5 = vector.broadcast %4 : vector<1x96xf32> to vector<16x96xf32>
    %6 = arith.addf %3, %5 : vector<16x96xf32>
    %c0_5 = arith.constant 0 : index
    %c0_6 = arith.constant 0 : index
    %7 = vector.load %arg4[%c0_5, %c0_6] : memref<16x96xf32, #tpu.memory_space<vmem>>, vector<16x96xf32>
    tpu.vector_store %arg4[%c0_5, %c0_6], %6 {strides = array<i32>} : memref<16x96xf32, #tpu.memory_space<vmem>>, vector<16x96xf32>,
    return
  }
  func.func @transform_0(%arg0: i32) -> (i32, i32) {
    %c0_i32 = arith.constant 0 : i32
    %c0_i32_0 = arith.constant 0 : i32
    return %arg0, %c0_i32 : i32, i32
  }
  func.func @transform_1(%arg0: i32) -> (i32, i32) {
    %c0_i32 = arith.constant 0 : i32
    %c0_i32_0 = arith.constant 0 : i32
    %c0_i32_1 = arith.constant 0 : i32
    return %c0_i32, %c0_i32_0 : i32, i32
  }
  func.func @transform_2(%arg0: i32) -> (i32, i32) {
    %c0_i32 = arith.constant 0 : i32
    %c0_i32_0 = arith.constant 0 : i32
    %c0_i32_1 = arith.constant 0 : i32
    return %c0_i32, %c0_i32_0 : i32, i32
  }
  func.func @transform_3(%arg0: i32) -> (i32, i32) {
    %c0_i32 = arith.constant 0 : i32
    %c0_i32_0 = arith.constant 0 : i32
    return %arg0, %c0_i32 : i32, i32
  }
}

</mosaic_0001>

<llo_original>
// kernel: tpu_custom_call.1
$region0: #{tpu_custom_call.1}
  #allocation0 [shape = 'u32[]', space=smem, size = 0x4, offset = 0x4, fixed_abs, tag = 'smem constant byte address 0x4 - core index']
  #allocation1 [shape = 'u32[144,128]{1,0:T(1,128)}', space=vmem, size = 0x12000, scoped, tag = 'internal scratch']
  %s0 = inlined_call_operand.hbm [shape: f32[16,32], index: 0, kind: input, shape index: {}]
  %s1 = inlined_call_operand.hbm [shape: bf16[32,96], index: 1, kind: input, shape index: {}]
  %s2 = inlined_call_operand.vmem [shape: f32[1,96], index: 2, kind: input, shape index: {}]
  %s3 = inlined_call_operand.hbm [shape: f32[16,96], index: 3, kind: output, shape index: {}]
  %s4 = sld [smem:[#allocation0]]
  $region30: #{tpu_custom_call.1} parent=0
    _
  %s6 = ssub.s32 1, %s4
  %s7 = scalar_select 0, %s6, %s4
  $region1: #{tpu_custom_call.1} parent=0
    #allocation2 [shape = 'u8[8192]{0}', space=vmem, size = 0x2000, scoped, tag = 'input window, operand 0, single buffered']
    #allocation3 [shape = 's32[1]{0}', space=sflag, size = 0x4, scoped, tag = 'scoped memory for tpu_custom_call.1']
    #allocation4 [shape = 's32[1]{0}', space=sflag, size = 0x4, scoped, tag = 'scoped memory for tpu_custom_call.1']
    #allocation5 [shape = 'u8[8192]{0}', space=vmem, size = 0x2000, scoped, tag = 'input window, operand 1, single buffered']
    #allocation6 [shape = 's32[1]{0}', space=sflag, size = 0x4, scoped, tag = 'scoped memory for tpu_custom_call.1']
    #allocation7 [shape = 'u8[8192]{0}', space=vmem, size = 0x2000, scoped, tag = 'output window, operand 0, single buffered']
    %8 = vsyncpa [#allocation3], 0
    %9 = vsyncpa [#allocation6], 0
    %10 = vsyncpa [#allocation4], 0
    // Predicated region
    $region2: #{tpu_custom_call.1} parent=1 // pred_check
      _
    $region3: #{tpu_custom_call.1} parent=1 // pred_check_branch
      %12 = sbr.rel (0) target = $region5
    $region4: #{tpu_custom_call.1} parent=1 // pred_region
      %s14 = ssub.s32 256, 256
      %15 = vsyncadd [#allocation3], %s14
      %s16 = sshll.u32 [#allocation2], 4
      %s17 = int_to_ptr.vmem [resolvable:$true] %s16
      %22 = dma.hbm_to_vmem [thread:$0]  %s0, 256, %s17, [#allocation3], 128, 128, 8
    $region5: #{tpu_custom_call.1} parent=1 // pred_fallthru
      _
    // Predicated region
    $region6: #{tpu_custom_call.1} parent=1 // pred_check
      _
    $region7: #{tpu_custom_call.1} parent=1 // pred_check_branch
      %24 = sbr.rel (0) target = $region9
    $region8: #{tpu_custom_call.1} parent=1 // pred_region
      %s26 = ssub.s32 256, 256
      %27 = vsyncadd [#allocation6], %s26
      %s28 = sshll.u32 [#allocation5], 4
      %s29 = int_to_ptr.vmem [resolvable:$true] %s28
      %34 = dma.hbm_to_vmem [thread:$0]  %s1, 256, %s29, [#allocation6], 64, 64, 4
    $region9: #{tpu_custom_call.1} parent=1 // pred_fallthru
      _
    // Predicated region
    $region10: #{tpu_custom_call.1} parent=1 // pred_check
      _
    $region11: #{tpu_custom_call.1} parent=1 // pred_check_branch
      %36 = sbr.rel (0) target = $region13
    $region12: #{tpu_custom_call.1} parent=1 // pred_region
      _
    $region13: #{tpu_custom_call.1} parent=1 // pred_fallthru
      _
    // Predicated region
    $region14: #{tpu_custom_call.1} parent=1 // pred_check
      _
    $region15: #{tpu_custom_call.1} parent=1 // pred_check_branch
      %38 = sbr.rel (0) target = $region17
    $region16: #{tpu_custom_call.1} parent=1 // pred_region
      %39 = dma.done [#allocation3], 256
    $region17: #{tpu_custom_call.1} parent=1 // pred_fallthru
      _
    // Predicated region
    $region18: #{tpu_custom_call.1} parent=1 // pred_check
      _
    $region19: #{tpu_custom_call.1} parent=1 // pred_check_branch
      %41 = sbr.rel (0) target = $region21
    $region20: #{tpu_custom_call.1} parent=1 // pred_region
      %42 = dma.done [#allocation6], 256
    $region21: #{tpu_custom_call.1} parent=1 // pred_fallthru
      _
    %v44 = vld [vmem:[#allocation2] sm:$0xff]
    %v45 = vld [vmem:[#allocation2 + $0x8] sm:$0xff]
    %v46 = vpack.c.bf16 %v45, %v44
    %v47 = vld [vmem:[#allocation5] sm:$0xf]
    %v48 = vld [vmem:[#allocation5 + $0x4] sm:$0xf]
    %v49 = vld [vmem:[#allocation5 + $0x8] sm:$0xf]
    %v50 = vld [vmem:[#allocation5 + $0xc] sm:$0xf]
    %v51 = vld [vmem:[%s2] sm:$0x1]
    %v53 = vlaneseq
    %v54 = vshrl.u32 %v53, 7
    %v55 = vsub.s32 0, %v54
    %v56 = vrot.slane %v51, %v55
    %v62 = vunpack.c.l.b16 %v47
    %v63 = vunpack.c.l.b16 %v48
    %v64 = vunpack.c.l.b16 %v49
    %v65 = vunpack.c.l.b16 %v50
    %v66 = vpack.c.b16 %v63, %v62
    %v67 = vpack.c.b16 %v65, %v64
    %vm70 = vcmask 261120
    %v72 = vsel %vm70, %v46, 0
    %74 = vmatprep.subr.bf16.mxu0 0
    %75 = vmatpush1.bf16.msra.mxu0 %v66
    %76 = vmatprep.subr.bf16.mxu0 0
    %77 = vmatpush1.bf16.msra.mxu0 %v67
    %78 = vmatprep.subr.bf16.mxu0 0
    %79 = vmatpush1.bf16.msra.mxu0 0
    %80 = vmatprep.subr.bf16.mxu0 0
    %81 = vmatpush1.bf16.msra.mxu0 0
    %82 = vmatprep.subr.bf16.mxu0 0
    %83 = vmatpush1.bf16.msra.mxu0 0
    %84 = vmatprep.subr.bf16.mxu0 0
    %85 = vmatpush1.bf16.msra.mxu0 0
    %86 = vmatprep.subr.bf16.mxu0 0
    %87 = vmatpush1.bf16.msra.mxu0 0
    %88 = vmatprep.subr.bf16.mxu0 0
    %89 = vmatpush1.bf16.msra.mxu0 0
    %90 = vmatprep.subr.bf16.mxu0 0
    %91 = vmatpush1.bf16.msra.mxu0 0
    %92 = vmatprep.subr.bf16.mxu0 0
    %93 = vmatpush1.bf16.msra.mxu0 0
    %94 = vmatprep.subr.bf16.mxu0 0
    %95 = vmatpush1.bf16.msra.mxu0 0
    %96 = vmatprep.subr.bf16.mxu0 0
    %97 = vmatpush1.bf16.msra.mxu0 0
    %98 = vmatprep.subr.bf16.mxu0 0
    %99 = vmatpush1.bf16.msra.mxu0 0
    %100 = vmatprep.subr.bf16.mxu0 0
    %101 = vmatpush1.bf16.msra.mxu0 0
    %102 = vmatprep.subr.bf16.mxu0 0
    %103 = vmatpush1.bf16.msra.mxu0 0
    %104 = vmatprep.subr.bf16.mxu0 0
    %105 = vmatpush1.bf16.msra.mxu0 0
    %106 = vmatprep.mubr.bf16.mxu0 0
    %107 = vmatmul.mubr.bf16.gmra.mrb[0].mxu0 %v72
    %v108 = vpop.f32.mrb[0].mxu0
    %v109 = vadd.f32 %v56, %v108
    %v110 = vpop.f32.mrb[0].mxu0
    %v111 = vpop.f32.mrb[0].mxu0
    %v112 = vadd.f32 %v56, %v111
    %v113 = vpop.f32.mrb[0].mxu0
    %114 = vdwg.mxu0
    %vm115 = vcmask 785408
    %116 = vst.msk [vmem:[#allocation7] sm:$0xff] %vm115, %v109
    %117 = vst.msk [vmem:[#allocation7 + $0x8] sm:$0xff] %vm115, %v112
    // Predicated region
    $region22: #{tpu_custom_call.1} parent=1 // pred_check
      _
    $region23: #{tpu_custom_call.1} parent=1 // pred_check_branch
      %119 = sbr.rel (0) target = $region25
    $region24: #{tpu_custom_call.1} parent=1 // pred_region
      %s121 = ssub.s32 256, 256
      %122 = vsyncadd [#allocation4], %s121
      %s123 = sshll.u32 [#allocation7], 4
      %s124 = int_to_ptr.vmem [resolvable:$true] %s123
      %129 = dma.vmem_to_hbm [thread:$0]  %s124, 256, %s3, [#allocation4], 128, 128, 8
    $region25: #{tpu_custom_call.1} parent=1 // pred_fallthru
      _
    // Predicated region
    $region26: #{tpu_custom_call.1} parent=1 // pred_check
      _
    $region27: #{tpu_custom_call.1} parent=1 // pred_check_branch
      %131 = sbr.rel (0) target = $region29
    $region28: #{tpu_custom_call.1} parent=1 // pred_region
      %132 = dma.done [#allocation4], 256
    $region29: #{tpu_custom_call.1} parent=1 // pred_fallthru
      _
    %133 = vsyncpa [#allocation3], 1
    %134 = vsyncpa [#allocation6], 1
    %135 = vsyncpa [#allocation4], 1

</llo_original>
